<compile_context>
chip_gen: v5e
topology: v5e:2x2
jax: 0.10.0
libtpu: 0.0.40
codegen_flags: <defaults>
</compile_context>

<pallas_src>
import functools

import jax
import jax.numpy as jnp
from jax.experimental import pallas as pl
from jax.experimental.pallas import tpu as pltpu

D_IN = 32
D_HID = 128


def _mlp_kernel(x_ref, w1_ref, b1_ref, w2_ref, b2_ref, o_ref, *, matmul_dtype):
    # x_ref:  (TILE_B, D_IN)    w1_ref: (D_IN, D_HID)    b1_ref: (1, D_HID)
    # w2_ref: (D_HID, D_HID)    b2_ref: (1, D_HID)       o_ref:  (TILE_B, D_HID)
    x = x_ref[...]
    w1 = w1_ref[...]
    w2 = w2_ref[...]
    if matmul_dtype != jnp.float32:
        # MXU-native inputs (bf16 on v6e/v7x); accumulate in f32.
        x = x.astype(matmul_dtype)
        w1 = w1.astype(matmul_dtype)
        w2 = w2.astype(matmul_dtype)

    h = jnp.dot(x, w1, preferred_element_type=jnp.float32) + b1_ref[...]
    h = jnp.maximum(h, 0.0)                      # bias + ReLU in f32 (VPU)
    if matmul_dtype != jnp.float32:
        h = h.astype(matmul_dtype)

    y = jnp.dot(h, w2, preferred_element_type=jnp.float32) + b2_ref[...]
    y = jnp.maximum(y, 0.0)
    o_ref[...] = y.astype(o_ref.dtype)


def high_level_encoder(x, w1, b1, w2, b2, *, tile_b=512, matmul_dtype=jnp.float32):
    """x: (B, D_IN) f32. w1: (D_IN, D_HID), b1: (1, D_HID), w2: (D_HID, D_HID),
    b2: (1, D_HID). Returns (B, D_HID) f32."""
    B = x.shape[0]

    # Batch tile: multiple of 8 sublanes, capped by the (padded) batch itself.
    b_ceil8 = max(8, -(-B // 8) * 8)
    tile_b = min(tile_b, b_ceil8)
    b_padded = -(-B // tile_b) * tile_b
    if b_padded != B:
        # Zero-pad the tail tile; rows are independent, padded rows are sliced off below.
        x = jnp.pad(x, ((0, b_padded - B), (0, 0)))
    grid = (b_padded // tile_b,)

    flops = 2 * b_padded * (D_IN * D_HID + D_HID * D_HID)
    bytes_accessed = 4 * (
        b_padded * D_IN + b_padded * D_HID          # x in, out
        + D_IN * D_HID + D_HID * D_HID + 2 * D_HID  # weights + biases (read once)
    )

    out = pl.pallas_call(
        functools.partial(_mlp_kernel, matmul_dtype=matmul_dtype),
        out_shape=jax.ShapeDtypeStruct((b_padded, D_HID), jnp.float32),
        grid_spec=pltpu.PrefetchScalarGridSpec(
            num_scalar_prefetch=0,
            grid=grid,
            in_specs=[
                pl.BlockSpec((tile_b, D_IN), lambda i: (i, 0)),     # x: walks batch
                pl.BlockSpec((D_IN, D_HID), lambda i: (0, 0)),      # w1: VMEM-resident
                pl.BlockSpec((1, D_HID), lambda i: (0, 0)),         # b1: VMEM-resident
                pl.BlockSpec((D_HID, D_HID), lambda i: (0, 0)),     # w2: VMEM-resident
                pl.BlockSpec((1, D_HID), lambda i: (0, 0)),         # b2: VMEM-resident
            ],
            out_specs=pl.BlockSpec((tile_b, D_HID), lambda i: (i, 0)),
        ),
        compiler_params=pltpu.CompilerParams(
            # Independent batch tiles: lets v7x shard grid steps across its 2 TCs.
            dimension_semantics=("parallel",),
        ),
        cost_estimate=pl.CostEstimate(
            flops=flops, transcendentals=0, bytes_accessed=bytes_accessed),
    )(x, w1, b1, w2, b2)

    return out[:B] if b_padded != B else out


def reference(x, w1, b1, w2, b2):
    h = jnp.maximum(x @ w1 + b1, 0.0)
    return jnp.maximum(h @ w2 + b2, 0.0)


if __name__ == "__main__":
    key = jax.random.PRNGKey(0)
    kx, k1, kb1, k2, kb2 = jax.random.split(key, 5)

    # Deterministic parameter init (uniform, like nn.Linear's kaiming-uniform range).
    lim1 = 1.0 / jnp.sqrt(D_IN)
    w1 = jax.random.uniform(k1, (D_IN, D_HID), jnp.float32, -lim1, lim1)
    b1 = jax.random.uniform(kb1, (1, D_HID), jnp.float32, -lim1, lim1)
    lim2 = 1.0 / jnp.sqrt(D_HID)
    w2 = jax.random.uniform(k2, (D_HID, D_HID), jnp.float32, -lim2, lim2)
    b2 = jax.random.uniform(kb2, (1, D_HID), jnp.float32, -lim2, lim2)

    # 1) Small batch (single grid step), f32 path, tight tolerance.
    B_small = 8
    x_small = jax.random.normal(kx, (B_small, D_IN), dtype=jnp.float32)
    out_small = high_level_encoder(x_small, w1, b1, w2, b2)
    jax.block_until_ready(out_small)
    ref_small = reference(x_small, w1, b1, w2, b2)
    assert out_small.shape == (B_small, D_HID)
    assert jnp.allclose(out_small, ref_small, atol=1e-5, rtol=1e-5)

    # 2) Larger, non-tile-multiple batch: exercises batch tiling + pad/slice tail.
    B_big = 640  # tile_b=512 -> padded to 1024, grid=(2,)
    x_big = jax.random.normal(kx, (B_big, D_IN), dtype=jnp.float32)
    out_big = high_level_encoder(x_big, w1, b1, w2, b2, tile_b=512)
    jax.block_until_ready(out_big)
    ref_big = reference(x_big, w1, b1, w2, b2)
    assert out_big.shape == (B_big, D_HID)
    assert jnp.allclose(out_big, ref_big, atol=1e-5, rtol=1e-5)

    # 3) bf16 matmul inputs (v6e/v7x MXU-native path), f32 accumulation; loose tolerance.
    out_bf16 = high_level_encoder(x_big, w1, b1, w2, b2, tile_b=512,
                                  matmul_dtype=jnp.bfloat16)
    jax.block_until_ready(out_bf16)
    assert jnp.allclose(out_bf16, ref_big, atol=1e-1, rtol=1e-1)

    print("KERNEL_OK")
</pallas_src>

<mosaic_0001>
module attributes {stable_mosaic.version = 11 : i64} {
  func.func @_mlp_kernel(%arg0: i32, %arg1: memref<8x32xf32, #tpu.memory_space<vmem>>, %arg2: memref<32x128xf32, #tpu.memory_space<vmem>>, %arg3: memref<1x128xf32, #tpu.memory_space<vmem>>, %arg4: memref<128x128xf32, #tpu.memory_space<vmem>>, %arg5: memref<1x128xf32, #tpu.memory_space<vmem>>, %arg6: memref<8x128xf32, #tpu.memory_space<vmem>>) attributes {dimension_semantics = [#tpu.dimension_semantics<parallel>], iteration_bounds = array<i64: 1>, scalar_prefetch = 0 : i64, scratch_operands = 0 : i64, tpu.core_type = #tpu.core_type<tc>, window_params = [{transform_indices = @transform_0, window_bounds = array<i64: 8, 32>}, {pipeline_mode = #tpu.pipeline_mode<synchronous>, transform_indices = @transform_1, window_bounds = array<i64: 32, 128>}, {pipeline_mode = #tpu.pipeline_mode<synchronous>, transform_indices = @transform_2, window_bounds = array<i64: 1, 128>}, {pipeline_mode = #tpu.pipeline_mode<synchronous>, transform_indices = @transform_3, window_bounds = array<i64: 128, 128>}, {pipeline_mode = #tpu.pipeline_mode<synchronous>, transform_indices = @transform_4, window_bounds = array<i64: 1, 128>}, {transform_indices = @transform_5, window_bounds = array<i64: 8, 128>}]} {
    %c0 = arith.constant 0 : index
    %c0_0 = arith.constant 0 : index
    %0 = vector.load %arg1[%c0, %c0_0] : memref<8x32xf32, #tpu.memory_space<vmem>>, vector<8x32xf32>
    %c0_1 = arith.constant 0 : index
    %c0_2 = arith.constant 0 : index
    %1 = vector.load %arg2[%c0_1, %c0_2] : memref<32x128xf32, #tpu.memory_space<vmem>>, vector<32x128xf32>
    %c0_3 = arith.constant 0 : index
    %c0_4 = arith.constant 0 : index
    %2 = vector.load %arg4[%c0_3, %c0_4] : memref<128x128xf32, #tpu.memory_space<vmem>>, vector<128x128xf32>
    %cst = arith.constant dense<0.000000e+00> : vector<8x128xf32>
    %3 = tpu.matmul %0, %1, %cst {dimension_numbers = #tpu.dot_dimension_numbers<[1], [0], [0], [1], [0, 0, 1, 1], [], []>} : vector<8x32xf32>, vector<32x128xf32>, vector<8x128xf32> -> vector<8x128xf32>
    %c0_5 = arith.constant 0 : index
    %c0_6 = arith.constant 0 : index
    %4 = vector.load %arg3[%c0_5, %c0_6] : memref<1x128xf32, #tpu.memory_space<vmem>>, vector<1x128xf32>
    %5 = vector.broadcast %4 : vector<1x128xf32> to vector<8x128xf32>
    %6 = arith.addf %3, %5 : vector<8x128xf32>
    %cst_7 = arith.constant 0.000000e+00 : f32
    %7 = vector.broadcast %cst_7 : f32 to vector<8x128xf32>
    %8 = arith.maximumf %6, %7 : vector<8x128xf32>
    %cst_8 = arith.constant dense<0.000000e+00> : vector<8x128xf32>
    %9 = tpu.matmul %8, %2, %cst_8 {dimension_numbers = #tpu.dot_dimension_numbers<[1], [0], [0], [1], [0, 0, 1, 1], [], []>} : vector<8x128xf32>, vector<128x128xf32>, vector<8x128xf32> -> vector<8x128xf32>
    %c0_9 = arith.constant 0 : index
    %c0_10 = arith.constant 0 : index
    %10 = vector.load %arg5[%c0_9, %c0_10] : memref<1x128xf32, #tpu.memory_space<vmem>>, vector<1x128xf32>
    %11 = vector.broadcast %10 : vector<1x128xf32> to vector<8x128xf32>
    %12 = arith.addf %9, %11 : vector<8x128xf32>
    %cst_11 = arith.constant 0.000000e+00 : f32
    %13 = vector.broadcast %cst_11 : f32 to vector<8x128xf32>
    %14 = arith.maximumf %12, %13 : vector<8x128xf32>
    %c0_12 = arith.constant 0 : index
    %c0_13 = arith.constant 0 : index
    %15 = vector.load %arg6[%c0_12, %c0_13] : memref<8x128xf32, #tpu.memory_space<vmem>>, vector<8x128xf32>
    tpu.vector_store %arg6[%c0_12, %c0_13], %14 {strides = array<i32>} : memref<8x128xf32, #tpu.memory_space<vmem>>, vector<8x128xf32>,
    return
  }
  func.func @transform_0(%arg0: i32) -> (i32, i32) {
    %c0_i32 = arith.constant 0 : i32
    %c0_i32_0 = arith.constant 0 : i32
    return %arg0, %c0_i32 : i32, i32
  }
  func.func @transform_1(%arg0: i32) -> (i32, i32) {
    %c0_i32 = arith.constant 0 : i32
    %c0_i32_0 = arith.constant 0 : i32
    %c0_i32_1 = arith.constant 0 : i32
    return %c0_i32, %c0_i32_0 : i32, i32
  }
  func.func @transform_2(%arg0: i32) -> (i32, i32) {
    %c0_i32 = arith.constant 0 : i32
    %c0_i32_0 = arith.constant 0 : i32
    %c0_i32_1 = arith.constant 0 : i32
    return %c0_i32, %c0_i32_0 : i32, i32
  }
  func.func @transform_3(%arg0: i32) -> (i32, i32) {
    %c0_i32 = arith.constant 0 : i32
    %c0_i32_0 = arith.constant 0 : i32
    %c0_i32_1 = arith.constant 0 : i32
    return %c0_i32, %c0_i32_0 : i32, i32
  }
  func.func @transform_4(%arg0: i32) -> (i32, i32) {
    %c0_i32 = arith.constant 0 : i32
    %c0_i32_0 = arith.constant 0 : i32
    %c0_i32_1 = arith.constant 0 : i32
    return %c0_i32, %c0_i32_0 : i32, i32
  }
  func.func @transform_5(%arg0: i32) -> (i32, i32) {
    %c0_i32 = arith.constant 0 : i32
    %c0_i32_0 = arith.constant 0 : i32
    return %arg0, %c0_i32 : i32, i32
  }
}

</mosaic_0001>

<llo_original>
// kernel: tpu_custom_call.1
$region0: #{tpu_custom_call.1}
  #allocation0 [shape = 'u32[]', space=smem, size = 0x4, offset = 0x4, fixed_abs, tag = 'smem constant byte address 0x4 - core index']
  #allocation1 [shape = 'u32[72,128]{1,0:T(1,128)}', space=vmem, size = 0x9000, scoped, tag = 'internal scratch']
  %s0 = inlined_call_operand.hbm [shape: f32[8,32], index: 0, kind: input, shape index: {}]
  %s1 = inlined_call_operand.hbm [shape: f32[32,128], index: 1, kind: input, shape index: {}]
  %s2 = inlined_call_operand.vmem [shape: f32[1,128], index: 2, kind: input, shape index: {}]
  %s3 = inlined_call_operand.hbm [shape: f32[128,128], index: 3, kind: input, shape index: {}]
  %s4 = inlined_call_operand.vmem [shape: f32[1,128], index: 4, kind: input, shape index: {}]
  %s5 = inlined_call_operand.hbm [shape: f32[8,128], index: 5, kind: output, shape index: {}]
  %s6 = sld [smem:[#allocation0]]
  $region42: #{tpu_custom_call.1} parent=0
    _
  %s8 = ssub.s32 1, %s6
  %s9 = scalar_select 0, %s8, %s6
  $region1: #{tpu_custom_call.1} parent=0
    #allocation2 [shape = 'u8[4096]{0}', space=vmem, size = 0x1000, scoped, tag = 'input window, operand 0, single buffered']
    #allocation3 [shape = 's32[1]{0}', space=sflag, size = 0x4, scoped, tag = 'scoped memory for tpu_custom_call.1']
    #allocation4 [shape = 's32[1]{0}', space=sflag, size = 0x4, scoped, tag = 'scoped memory for tpu_custom_call.1']
    #allocation5 [shape = 'u8[16384]{0}', space=vmem, size = 0x4000, scoped, tag = 'input window, operand 1, single buffered']
    #allocation6 [shape = 's32[1]{0}', space=sflag, size = 0x4, scoped, tag = 'scoped memory for tpu_custom_call.1']
    #allocation7 [shape = 'u8[65536]{0}', space=vmem, size = 0x10000, scoped, tag = 'input window, operand 3, single buffered']
    #allocation8 [shape = 'u8[4096]{0}', space=vmem, size = 0x1000, scoped, tag = 'output window, operand 0, single buffered']
    %10 = vsyncpa [#allocation3], 0
    %11 = vsyncpa [#allocation6], 0
    %12 = vsyncpa [#allocation4], 0
    // Predicated region
    $region2: #{tpu_custom_call.1} parent=1 // pred_check
      _
    $region3: #{tpu_custom_call.1} parent=1 // pred_check_branch
      %14 = sbr.rel (0) target = $region5
    $region4: #{tpu_custom_call.1} parent=1 // pred_region
      %16 = vsyncadd [#allocation3], 0
      %s18 = sshll.u32 %s0, 4
      %s19 = int_to_ptr.hbm [resolvable:$true] %s18
      %s20 = sshll.u32 [#allocation2], 4
      %s21 = int_to_ptr.vmem [resolvable:$true] %s20
      %23 = dma.hbm_to_vmem [thread:$0]  %s19, 128, %s21, [#allocation3]
    $region5: #{tpu_custom_call.1} parent=1 // pred_fallthru
      _
    // Predicated region
    $region6: #{tpu_custom_call.1} parent=1 // pred_check
      _
    $region7: #{tpu_custom_call.1} parent=1 // pred_check_branch
      %25 = sbr.rel (0) target = $region9
    $region8: #{tpu_custom_call.1} parent=1 // pred_region
      %27 = vsyncadd [#allocation6], 0
      %s28 = sshll.u32 %s1, 4
      %s29 = int_to_ptr.hbm [resolvable:$true] %s28
      %s30 = sshll.u32 [#allocation5], 4
      %s31 = int_to_ptr.vmem [resolvable:$true] %s30
      %36 = dma.hbm_to_vmem [thread:$0]  %s29, 512, %s31, [#allocation6], 128, 128, 8
    $region9: #{tpu_custom_call.1} parent=1 // pred_fallthru
      _
    // Predicated region
    $region10: #{tpu_custom_call.1} parent=1 // pred_check
      _
    $region11: #{tpu_custom_call.1} parent=1 // pred_check_branch
      %38 = sbr.rel (0) target = $region13
    $region12: #{tpu_custom_call.1} parent=1 // pred_region
      _
    $region13: #{tpu_custom_call.1} parent=1 // pred_fallthru
      _
    // Predicated region
    $region14: #{tpu_custom_call.1} parent=1 // pred_check
      _
    $region15: #{tpu_custom_call.1} parent=1 // pred_check_branch
      %40 = sbr.rel (0) target = $region17
    $region16: #{tpu_custom_call.1} parent=1 // pred_region
      %42 = vsyncadd [#allocation6], 0
      %s43 = sshll.u32 %s3, 4
      %s44 = int_to_ptr.hbm [resolvable:$true] %s43
      %s45 = sshll.u32 [#allocation7], 4
      %s46 = int_to_ptr.vmem [resolvable:$true] %s45
      %51 = dma.hbm_to_vmem [thread:$0]  %s44, 2048, %s46, [#allocation6], 128, 128, 8
    $region17: #{tpu_custom_call.1} parent=1 // pred_fallthru
      _
    // Predicated region
    $region18: #{tpu_custom_call.1} parent=1 // pred_check
      _
    $region19: #{tpu_custom_call.1} parent=1 // pred_check_branch
      %53 = sbr.rel (0) target = $region21
    $region20: #{tpu_custom_call.1} parent=1 // pred_region
      _
    $region21: #{tpu_custom_call.1} parent=1 // pred_fallthru
      _
    // Predicated region
    $region22: #{tpu_custom_call.1} parent=1 // pred_check
      _
    $region23: #{tpu_custom_call.1} parent=1 // pred_check_branch
      %55 = sbr.rel (0) target = $region25
    $region24: #{tpu_custom_call.1} parent=1 // pred_region
      %57 = dma.done [#allocation3], 128
    $region25: #{tpu_custom_call.1} parent=1 // pred_fallthru
      _
    // Predicated region
    $region26: #{tpu_custom_call.1} parent=1 // pred_check
      _
    $region27: #{tpu_custom_call.1} parent=1 // pred_check_branch
      %59 = sbr.rel (0) target = $region29
    $region28: #{tpu_custom_call.1} parent=1 // pred_region
      %61 = dma.done [#allocation6], 512
    $region29: #{tpu_custom_call.1} parent=1 // pred_fallthru
      _
    // Predicated region
    $region30: #{tpu_custom_call.1} parent=1 // pred_check
      _
    $region31: #{tpu_custom_call.1} parent=1 // pred_check_branch
      %63 = sbr.rel (0) target = $region33
    $region32: #{tpu_custom_call.1} parent=1 // pred_region
      %65 = dma.done [#allocation6], 2048
    $region33: #{tpu_custom_call.1} parent=1 // pred_fallthru
      _
    %v66 = vld [vmem:[#allocation2] sm:$0xff]
    %v67 = vld [vmem:[#allocation5] sm:$0xff]
    %v68 = vld [vmem:[#allocation5 + $0x8] sm:$0xff]
    %v69 = vld [vmem:[#allocation5 + $0x10] sm:$0xff]
    %v70 = vld [vmem:[#allocation5 + $0x18] sm:$0xff]
    %v71 = vld [vmem:[#allocation7] sm:$0xff]
    %v72 = vld [vmem:[#allocation7 + $0x8] sm:$0xff]
    %v73 = vld [vmem:[#allocation7 + $0x10] sm:$0xff]
    %v74 = vld [vmem:[#allocation7 + $0x18] sm:$0xff]
    %v75 = vld [vmem:[#allocation7 + $0x20] sm:$0xff]
    %v76 = vld [vmem:[#allocation7 + $0x28] sm:$0xff]
    %v77 = vld [vmem:[#allocation7 + $0x30] sm:$0xff]
    %v78 = vld [vmem:[#allocation7 + $0x38] sm:$0xff]
    %v79 = vld [vmem:[#allocation7 + $0x40] sm:$0xff]
    %v80 = vld [vmem:[#allocation7 + $0x48] sm:$0xff]
    %v81 = vld [vmem:[#allocation7 + $0x50] sm:$0xff]
    %v82 = vld [vmem:[#allocation7 + $0x58] sm:$0xff]
    %v83 = vld [vmem:[#allocation7 + $0x60] sm:$0xff]
    %v84 = vld [vmem:[#allocation7 + $0x68] sm:$0xff]
    %v85 = vld [vmem:[#allocation7 + $0x70] sm:$0xff]
    %v86 = vld [vmem:[#allocation7 + $0x78] sm:$0xff]
    %v87 = vld [vmem:[%s2] sm:$0x1]
    %v89 = vperm.slane %v87, 0
    %vm91 = vcmask 261120
    %v93 = vsel %vm91, %v66, 0
    %95 = vmatpush.msra.mxu0 0.0
    %96 = vmatpush.msra.mxu0 0.0
    %97 = vmatpush.msra.mxu0 0.0
    %98 = vmatpush.msra.mxu0 0.0
    %99 = vmatpush.msra.mxu0 0.0
    %100 = vmatpush.msra.mxu0 0.0
    %101 = vmatpush.msra.mxu0 0.0
    %102 = vmatpush.msra.mxu0 0.0
    %103 = vmatpush.msra.mxu0 0.0
    %104 = vmatpush.msra.mxu0 0.0
    %105 = vmatpush.msra.mxu0 0.0
    %106 = vmatpush.msra.mxu0 0.0
    %107 = vmatpush.msra.mxu0 %v70
    %108 = vmatpush.msra.mxu0 %v69
    %109 = vmatpush.msra.mxu0 %v68
    %110 = vmatpush.msra.mxu0 %v67
    %111 = vmatmul.f32.gmra.mxu0 %v93
    %v112 = vpop.f32.mrf.mxu0
    %v113 = vadd.f32 %v89, %v112
    %114 = vdwg.mxu0
    %v115 = vmax.f32 %v113, 0.0
    %v116 = vld [vmem:[%s4] sm:$0x1]
    %v118 = vperm.slane %v116, 0
    %120 = vmatpush.msra.mxu0 %v86
    %121 = vmatpush.msra.mxu0 %v85
    %122 = vmatpush.msra.mxu0 %v84
    %123 = vmatpush.msra.mxu0 %v83
    %124 = vmatpush.msra.mxu0 %v82
    %125 = vmatpush.msra.mxu0 %v81
    %126 = vmatpush.msra.mxu0 %v80
    %127 = vmatpush.msra.mxu0 %v79
    %128 = vmatpush.msra.mxu0 %v78
    %129 = vmatpush.msra.mxu0 %v77
    %130 = vmatpush.msra.mxu0 %v76
    %131 = vmatpush.msra.mxu0 %v75
    %132 = vmatpush.msra.mxu0 %v74
    %133 = vmatpush.msra.mxu0 %v73
    %134 = vmatpush.msra.mxu0 %v72
    %135 = vmatpush.msra.mxu0 %v71
    %136 = vmatmul.f32.gmra.mxu0 %v115
    %v137 = vpop.f32.mrf.mxu0
    %v138 = vadd.f32 %v118, %v137
    %139 = vdwg.mxu0
    %v140 = vmax.f32 %v138, 0.0
    %141 = vst [vmem:[#allocation8] sm:$0xff] %v140
    // Predicated region
    $region34: #{tpu_custom_call.1} parent=1 // pred_check
      _
    $region35: #{tpu_custom_call.1} parent=1 // pred_check_branch
      %143 = sbr.rel (0) target = $region37
    $region36: #{tpu_custom_call.1} parent=1 // pred_region
      %145 = vsyncadd [#allocation4], 0
      %s147 = sshll.u32 [#allocation8], 4
      %s148 = int_to_ptr.vmem [resolvable:$true] %s147
      %s149 = sshll.u32 %s5, 4
      %s150 = int_to_ptr.hbm [resolvable:$true] %s149
      %152 = dma.vmem_to_hbm [thread:$0]  %s148, 128, %s150, [#allocation4]
    $region37: #{tpu_custom_call.1} parent=1 // pred_fallthru
      _
    // Predicated region
    $region38: #{tpu_custom_call.1} parent=1 // pred_check
      _
    $region39: #{tpu_custom_call.1} parent=1 // pred_check_branch
      %154 = sbr.rel (0) target = $region41
    $region40: #{tpu_custom_call.1} parent=1 // pred_region
      %156 = dma.done [#allocation4], 128
    $region41: #{tpu_custom_call.1} parent=1 // pred_fallthru
      _
    %157 = vsyncpa [#allocation3], 1
    %158 = vsyncpa [#allocation6], 1
    %159 = vsyncpa [#allocation4], 1

</llo_original>
